<compile_context>
chip_gen: v7x
topology: tpu7x:2x2x1
jax: 0.10.0
libtpu: 0.0.40
codegen_flags: <defaults>
</compile_context>

<pallas_src>
import functools

import jax
import jax.numpy as jnp
from jax.experimental import pallas as pl
from jax.experimental.pallas import tpu as pltpu


def _round_up(x, m):
    return ((x + m - 1) // m) * m


def _pick_batch_tile(B, D, C, in_itemsize, logit_itemsize):
    """Largest batch tile (multiple of 8) whose double-buffered blocks fit a
    conservative VMEM budget that is safe on v5e/v6e (128 MiB) and v7x (64 MiB)."""
    budget = 12 * 1024 * 1024  # bytes, leaves headroom for compiler scratch
    per_row = 2 * (2 * D * in_itemsize + C * logit_itemsize + 4)  # 2x for double-buffering
    tb = budget // max(per_row, 1)
    tb = max(8, min(1024, (tb // 8) * 8))
    tb = min(tb, _round_up(B, 8))
    return tb


def _distill_loss_kernel(sh_ref, th_ref, logits_ref, labels_ref, out_ref,
                         acc_hidden, acc_nll, acc_cnt,
                         *, hidden_w, ce_w, ignore_index, eps, batch_total, tile_b):
    pid = pl.program_id(0)
    nblk = pl.num_programs(0)

    @pl.when(pid == 0)
    def _():
        acc_hidden[...] = jnp.zeros_like(acc_hidden)
        acc_nll[...] = jnp.zeros_like(acc_nll)
        acc_cnt[...] = jnp.zeros_like(acc_cnt)

    # Mask for padded rows of the (possibly) ragged last tile.
    row_idx = pid * tile_b + jax.lax.broadcasted_iota(jnp.int32, (tile_b, 1), 0)
    row_valid = (row_idx < batch_total).astype(jnp.float32)           # (TB, 1)

    # ---- cosine embedding loss partial sum (target = +1) ----
    s = sh_ref[...].astype(jnp.float32)                                # (TB, D)
    t = th_ref[...].astype(jnp.float32)                                # (TB, D)
    dot = jnp.sum(s * t, axis=-1, keepdims=True)                       # (TB, 1)
    ss = jnp.sum(s * s, axis=-1, keepdims=True)                        # (TB, 1)
    tt = jnp.sum(t * t, axis=-1, keepdims=True)                        # (TB, 1)
    eps2 = eps * eps
    # dot / (max(||s||, eps) * max(||t||, eps))  computed on the EUP via rsqrt
    cos = dot * jax.lax.rsqrt(jnp.maximum(ss, eps2) * jnp.maximum(tt, eps2))
    acc_hidden[...] += jnp.sum((1.0 - cos) * row_valid, keepdims=True)  # (1, 1)

    # ---- cross entropy partial sums (no materialized log-softmax) ----
    logits = logits_ref[...].astype(jnp.float32)                       # (TB, C)
    labels = labels_ref[...]                                           # (TB, 1) int32
    m = jnp.max(logits, axis=-1, keepdims=True)                        # (TB, 1)
    sumexp = jnp.sum(jnp.exp(logits - m), axis=-1, keepdims=True)      # (TB, 1)
    lse = m + jnp.log(sumexp)                                          # (TB, 1)
    col = jax.lax.broadcasted_iota(jnp.int32, logits.shape, 1)
    onehot = (col == labels).astype(jnp.float32)                       # (TB, C)
    picked = jnp.sum(logits * onehot, axis=-1, keepdims=True)          # (TB, 1)
    nll = lse - picked                                                 # (TB, 1)
    valid = jnp.where(labels != ignore_index, 1.0, 0.0) * row_valid    # (TB, 1)
    acc_nll[...] += jnp.sum(nll * valid, keepdims=True)                # (1, 1)
    acc_cnt[...] += jnp.sum(valid, keepdims=True)                      # (1, 1)

    @pl.when(pid == nblk - 1)
    def _():
        hidden_loss = acc_hidden[...] / batch_total
        # Divide by the valid count directly: matches torch (NaN when all ignored).
        ce_loss = acc_nll[...] / acc_cnt[...]
        out_ref[...] = hidden_w * hidden_loss + ce_w * ce_loss


def cosine_distillation_loss(student_hidden, teacher_hidden, student_logits, labels,
                             hidden_rep_loss_weight=0.5, ce_loss_weight=0.5,
                             ignore_index=-100):
    """Compute the distillation loss. labels: int array of shape (B,)."""
    B, D = student_hidden.shape
    C = student_logits.shape[-1]
    labels2d = labels.astype(jnp.int32).reshape(B, 1)

    in_itemsize = max(jnp.dtype(student_hidden.dtype).itemsize,
                      jnp.dtype(teacher_hidden.dtype).itemsize)
    logit_itemsize = jnp.dtype(student_logits.dtype).itemsize
    tb = _pick_batch_tile(B, D, C, in_itemsize, logit_itemsize)

    # Pad batch to a multiple of the tile; padded rows are masked inside the kernel.
    Bp = _round_up(B, tb)
    if Bp != B:
        pad = Bp - B
        student_hidden = jnp.pad(student_hidden, ((0, pad), (0, 0)))
        teacher_hidden = jnp.pad(teacher_hidden, ((0, pad), (0, 0)))
        student_logits = jnp.pad(student_logits, ((0, pad), (0, 0)))
        labels2d = jnp.pad(labels2d, ((0, pad), (0, 0)), constant_values=ignore_index)
    n_blocks = Bp // tb

    kernel = functools.partial(
        _distill_loss_kernel,
        hidden_w=float(hidden_rep_loss_weight),   # plain Python scalars -> jaxpr literals
        ce_w=float(ce_loss_weight),
        ignore_index=int(ignore_index),
        eps=1e-8,
        batch_total=int(B),
        tile_b=int(tb),
    )

    out = pl.pallas_call(
        kernel,
        out_shape=jax.ShapeDtypeStruct((1, 1), jnp.float32),
        grid_spec=pltpu.PrefetchScalarGridSpec(
            num_scalar_prefetch=0,
            grid=(n_blocks,),
            in_specs=[
                pl.BlockSpec((tb, D), lambda i: (i, 0)),  # student_hidden
                pl.BlockSpec((tb, D), lambda i: (i, 0)),  # teacher_hidden
                pl.BlockSpec((tb, C), lambda i: (i, 0)),  # student_logits
                pl.BlockSpec((tb, 1), lambda i: (i, 0)),  # labels (int32, lane dim = full)
            ],
            out_specs=pl.BlockSpec((1, 1), lambda i: (0, 0)),
            scratch_shapes=[pltpu.VMEM((1, 1), jnp.float32)] * 3,
        ),
        compiler_params=pltpu.CompilerParams(
            dimension_semantics=("arbitrary",),   # grid axis reduces into shared scratch
            vmem_limit_bytes=32 * 1024 * 1024,
        ),
    )(student_hidden, teacher_hidden, student_logits, labels2d)
    return out[0, 0]


if __name__ == "__main__":
    # Small deterministic example: batch=8, hidden=32, num_classes=16.
    B, D, C = 8, 32, 16
    key = jax.random.PRNGKey(0)
    k1, k2, k3, k4 = jax.random.split(key, 4)

    student_hidden = jax.random.normal(k1, (B, D), dtype=jnp.float32)
    teacher_hidden = jax.random.normal(k2, (B, D), dtype=jnp.float32)
    student_logits = jax.random.normal(k3, (B, C), dtype=jnp.float32)
    labels = jax.random.randint(k4, (B,), 0, C, dtype=jnp.int32)

    loss = cosine_distillation_loss(student_hidden, teacher_hidden, student_logits, labels)
    jax.block_until_ready(loss)

    # Pure-JAX reference (same math as the PyTorch module).
    eps = 1e-8
    ns = jnp.maximum(jnp.linalg.norm(student_hidden, axis=-1), eps)
    nt = jnp.maximum(jnp.linalg.norm(teacher_hidden, axis=-1), eps)
    cos = jnp.sum(student_hidden * teacher_hidden, -1) / (ns * nt)
    hidden_ref = jnp.mean(1.0 - cos)
    logp = jax.nn.log_softmax(student_logits, axis=-1)
    ce_ref = jnp.mean(-jnp.take_along_axis(logp, labels[:, None], axis=-1)[:, 0])
    ref = 0.5 * hidden_ref + 0.5 * ce_ref
    assert jnp.allclose(loss, ref, atol=1e-5, rtol=1e-5), (loss, ref)

    print("KERNEL_OK")
</pallas_src>

<mosaic_0001>
module attributes {stable_mosaic.version = 11 : i64} {
  func.func @_distill_loss_kernel(%arg0: i32, %arg1: memref<8x32xf32, #tpu.memory_space<vmem>>, %arg2: memref<8x32xf32, #tpu.memory_space<vmem>>, %arg3: memref<8x16xf32, #tpu.memory_space<vmem>>, %arg4: memref<8x1xi32, #tpu.memory_space<vmem>>, %arg5: memref<1x1xf32, #tpu.memory_space<vmem>>, %arg6: memref<1x1xf32, #tpu.memory_space<vmem>>, %arg7: memref<1x1xf32, #tpu.memory_space<vmem>>, %arg8: memref<1x1xf32, #tpu.memory_space<vmem>>) attributes {dimension_semantics = [#tpu.dimension_semantics<arbitrary>], iteration_bounds = array<i64: 1>, scalar_prefetch = 0 : i64, scratch_operands = 3 : i64, tpu.core_type = #tpu.core_type<tc>, window_params = [{transform_indices = @transform_0, window_bounds = array<i64: 8, 32>}, {transform_indices = @transform_1, window_bounds = array<i64: 8, 32>}, {transform_indices = @transform_2, window_bounds = array<i64: 8, 16>}, {transform_indices = @transform_3, window_bounds = array<i64: 8, 1>}, {pipeline_mode = #tpu.pipeline_mode<synchronous>, transform_indices = @transform_4, window_bounds = array<i64: 1, 1>}]} {
    %c0_i32 = arith.constant 0 : i32
    %0 = arith.cmpi eq, %arg0, %c0_i32 : i32
    %1 = arith.extui %0 : i1 to i32
    %c0_i32_0 = arith.constant 0 : i32
    %2 = arith.cmpi ne, %1, %c0_i32_0 : i32
    scf.if %2 {
      %cst_36 = arith.constant 0.000000e+00 : f32
      %86 = vector.broadcast %cst_36 : f32 to vector<1x1xf32>
      %c0_37 = arith.constant 0 : index
      %c0_38 = arith.constant 0 : index
      %87 = vector.load %arg6[%c0_37, %c0_38] : memref<1x1xf32, #tpu.memory_space<vmem>>, vector<1x1xf32>
      tpu.vector_store %arg6[%c0_37, %c0_38], %86 {strides = array<i32>} : memref<1x1xf32, #tpu.memory_space<vmem>>, vector<1x1xf32>,
      %cst_39 = arith.constant 0.000000e+00 : f32
      %88 = vector.broadcast %cst_39 : f32 to vector<1x1xf32>
      %c0_40 = arith.constant 0 : index
      %c0_41 = arith.constant 0 : index
      %89 = vector.load %arg7[%c0_40, %c0_41] : memref<1x1xf32, #tpu.memory_space<vmem>>, vector<1x1xf32>
      tpu.vector_store %arg7[%c0_40, %c0_41], %88 {strides = array<i32>} : memref<1x1xf32, #tpu.memory_space<vmem>>, vector<1x1xf32>,
      %cst_42 = arith.constant 0.000000e+00 : f32
      %90 = vector.broadcast %cst_42 : f32 to vector<1x1xf32>
      %c0_43 = arith.constant 0 : index
      %c0_44 = arith.constant 0 : index
      %91 = vector.load %arg8[%c0_43, %c0_44] : memref<1x1xf32, #tpu.memory_space<vmem>>, vector<1x1xf32>
      tpu.vector_store %arg8[%c0_43, %c0_44], %90 {strides = array<i32>} : memref<1x1xf32, #tpu.memory_space<vmem>>, vector<1x1xf32>,
    } else {
    }
    %c8_i32 = arith.constant 8 : i32
    %3 = arith.muli %arg0, %c8_i32 : i32
    %4 = tpu.iota {dimensions = array<i32: 0>} : vector<8x1xi32>
    %5 = vector.broadcast %3 : i32 to vector<8x1xi32>
    %6 = arith.addi %5, %4 : vector<8x1xi32>
    %c8_i32_1 = arith.constant 8 : i32
    %7 = vector.broadcast %c8_i32_1 : i32 to vector<8x1xi32>
    %8 = arith.cmpi slt, %6, %7 : vector<8x1xi32>
    %9 = arith.extui %8 : vector<8x1xi1> to vector<8x1xi32>
    %10 = arith.sitofp %9 : vector<8x1xi32> to vector<8x1xf32>
    %c0 = arith.constant 0 : index
    %c0_2 = arith.constant 0 : index
    %11 = vector.load %arg1[%c0, %c0_2] : memref<8x32xf32, #tpu.memory_space<vmem>>, vector<8x32xf32>
    %c0_3 = arith.constant 0 : index
    %c0_4 = arith.constant 0 : index
    %12 = vector.load %arg2[%c0_3, %c0_4] : memref<8x32xf32, #tpu.memory_space<vmem>>, vector<8x32xf32>
    %13 = arith.mulf %11, %12 : vector<8x32xf32>
    %cst = arith.constant dense<0.000000e+00> : vector<8xf32>
    %14 = vector.multi_reduction <add>, %13, %cst [1] : vector<8x32xf32> to vector<8xf32>
    %15 = vector.shape_cast %14 : vector<8xf32> to vector<8x1xf32>
    %16 = arith.mulf %11, %11 : vector<8x32xf32>
    %cst_5 = arith.constant dense<0.000000e+00> : vector<8xf32>
    %17 = vector.multi_reduction <add>, %16, %cst_5 [1] : vector<8x32xf32> to vector<8xf32>
    %18 = vector.shape_cast %17 : vector<8xf32> to vector<8x1xf32>
    %19 = arith.mulf %12, %12 : vector<8x32xf32>
    %cst_6 = arith.constant dense<0.000000e+00> : vector<8xf32>
    %20 = vector.multi_reduction <add>, %19, %cst_6 [1] : vector<8x32xf32> to vector<8xf32>
    %21 = vector.shape_cast %20 : vector<8xf32> to vector<8x1xf32>
    %cst_7 = arith.constant 1.000000e-16 : f32
    %22 = vector.broadcast %cst_7 : f32 to vector<8x1xf32>
    %23 = arith.maximumf %18, %22 : vector<8x1xf32>
    %cst_8 = arith.constant 1.000000e-16 : f32
    %24 = vector.broadcast %cst_8 : f32 to vector<8x1xf32>
    %25 = arith.maximumf %21, %24 : vector<8x1xf32>
    %26 = arith.mulf %23, %25 : vector<8x1xf32>
    %27 = math.rsqrt %26 : vector<8x1xf32>
    %28 = arith.mulf %15, %27 : vector<8x1xf32>
    %c0_9 = arith.constant 0 : index
    %c0_10 = arith.constant 0 : index
    %29 = vector.load %arg6[%c0_9, %c0_10] : memref<1x1xf32, #tpu.memory_space<vmem>>, vector<1x1xf32>
    %cst_11 = arith.constant 1.000000e+00 : f32
    %30 = vector.broadcast %cst_11 : f32 to vector<8x1xf32>
    %31 = arith.subf %30, %28 : vector<8x1xf32>
    %32 = arith.mulf %31, %10 : vector<8x1xf32>
    %33 = vector.shape_cast %32 : vector<8x1xf32> to vector<1x8x1xf32>
    %cst_12 = arith.constant dense<0.000000e+00> : vector<1xf32>
    %34 = vector.multi_reduction <add>, %33, %cst_12 [1, 2] : vector<1x8x1xf32> to vector<1xf32>
    %35 = vector.shape_cast %34 : vector<1xf32> to vector<1x1x1xf32>
    %36 = vector.extract %35[0, 0, 0] : f32 from vector<1x1x1xf32>
    %37 = vector.broadcast %36 : f32 to vector<1x1xf32>
    %38 = arith.addf %29, %37 : vector<1x1xf32>
    %c0_13 = arith.constant 0 : index
    %c0_14 = arith.constant 0 : index
    %39 = vector.load %arg6[%c0_13, %c0_14] : memref<1x1xf32, #tpu.memory_space<vmem>>, vector<1x1xf32>
    tpu.vector_store %arg6[%c0_13, %c0_14], %38 {strides = array<i32>} : memref<1x1xf32, #tpu.memory_space<vmem>>, vector<1x1xf32>,
    %c0_15 = arith.constant 0 : index
    %c0_16 = arith.constant 0 : index
    %40 = vector.load %arg3[%c0_15, %c0_16] : memref<8x16xf32, #tpu.memory_space<vmem>>, vector<8x16xf32>
    %c0_17 = arith.constant 0 : index
    %c0_18 = arith.constant 0 : index
    %41 = vector.load %arg4[%c0_17, %c0_18] : memref<8x1xi32, #tpu.memory_space<vmem>>, vector<8x1xi32>
    %cst_19 = arith.constant dense<0xFF800000> : vector<8xf32>
    %42 = vector.multi_reduction <maximumf>, %40, %cst_19 [1] : vector<8x16xf32> to vector<8xf32>
    %43 = vector.shape_cast %42 : vector<8xf32> to vector<8x1xf32>
    %44 = vector.broadcast %43 : vector<8x1xf32> to vector<8x16xf32>
    %45 = arith.subf %40, %44 : vector<8x16xf32>
    %46 = math.exp %45 : vector<8x16xf32>
    %cst_20 = arith.constant dense<0.000000e+00> : vector<8xf32>
    %47 = vector.multi_reduction <add>, %46, %cst_20 [1] : vector<8x16xf32> to vector<8xf32>
    %48 = vector.shape_cast %47 : vector<8xf32> to vector<8x1xf32>
    %49 = math.log %48 : vector<8x1xf32>
    %50 = arith.addf %43, %49 : vector<8x1xf32>
    %51 = tpu.iota {dimensions = array<i32: 1>} : vector<8x16xi32>
    %52 = vector.broadcast %41 : vector<8x1xi32> to vector<8x16xi32>
    %53 = arith.cmpi eq, %51, %52 : vector<8x16xi32>
    %54 = arith.extui %53 : vector<8x16xi1> to vector<8x16xi32>
    %55 = arith.sitofp %54 : vector<8x16xi32> to vector<8x16xf32>
    %56 = arith.mulf %40, %55 : vector<8x16xf32>
    %cst_21 = arith.constant dense<0.000000e+00> : vector<8xf32>
    %57 = vector.multi_reduction <add>, %56, %cst_21 [1] : vector<8x16xf32> to vector<8xf32>
    %58 = vector.shape_cast %57 : vector<8xf32> to vector<8x1xf32>
    %59 = arith.subf %50, %58 : vector<8x1xf32>
    %c-100_i32 = arith.constant -100 : i32
    %60 = vector.broadcast %c-100_i32 : i32 to vector<8x1xi32>
    %61 = arith.cmpi ne, %41, %60 : vector<8x1xi32>
    %cst_22 = arith.constant 1.000000e+00 : f32
    %cst_23 = arith.constant 0.000000e+00 : f32
    %62 = vector.broadcast %cst_22 : f32 to vector<8x1xf32>
    %63 = vector.broadcast %cst_23 : f32 to vector<8x1xf32>
    %64 = arith.select %61, %62, %63 : vector<8x1xi1>, vector<8x1xf32>
    %65 = arith.mulf %64, %10 : vector<8x1xf32>
    %c0_24 = arith.constant 0 : index
    %c0_25 = arith.constant 0 : index
    %66 = vector.load %arg7[%c0_24, %c0_25] : memref<1x1xf32, #tpu.memory_space<vmem>>, vector<1x1xf32>
    %67 = arith.mulf %59, %65 : vector<8x1xf32>
    %68 = vector.shape_cast %67 : vector<8x1xf32> to vector<1x8x1xf32>
    %cst_26 = arith.constant dense<0.000000e+00> : vector<1xf32>
    %69 = vector.multi_reduction <add>, %68, %cst_26 [1, 2] : vector<1x8x1xf32> to vector<1xf32>
    %70 = vector.shape_cast %69 : vector<1xf32> to vector<1x1x1xf32>
    %71 = vector.extract %70[0, 0, 0] : f32 from vector<1x1x1xf32>
    %72 = vector.broadcast %71 : f32 to vector<1x1xf32>
    %73 = arith.addf %66, %72 : vector<1x1xf32>
    %c0_27 = arith.constant 0 : index
    %c0_28 = arith.constant 0 : index
    %74 = vector.load %arg7[%c0_27, %c0_28] : memref<1x1xf32, #tpu.memory_space<vmem>>, vector<1x1xf32>
    tpu.vector_store %arg7[%c0_27, %c0_28], %73 {strides = array<i32>} : memref<1x1xf32, #tpu.memory_space<vmem>>, vector<1x1xf32>,
    %c0_29 = arith.constant 0 : index
    %c0_30 = arith.constant 0 : index
    %75 = vector.load %arg8[%c0_29, %c0_30] : memref<1x1xf32, #tpu.memory_space<vmem>>, vector<1x1xf32>
    %76 = vector.shape_cast %65 : vector<8x1xf32> to vector<1x8x1xf32>
    %cst_31 = arith.constant dense<0.000000e+00> : vector<1xf32>
    %77 = vector.multi_reduction <add>, %76, %cst_31 [1, 2] : vector<1x8x1xf32> to vector<1xf32>
    %78 = vector.shape_cast %77 : vector<1xf32> to vector<1x1x1xf32>
    %79 = vector.extract %78[0, 0, 0] : f32 from vector<1x1x1xf32>
    %80 = vector.broadcast %79 : f32 to vector<1x1xf32>
    %81 = arith.addf %75, %80 : vector<1x1xf32>
    %c0_32 = arith.constant 0 : index
    %c0_33 = arith.constant 0 : index
    %82 = vector.load %arg8[%c0_32, %c0_33] : memref<1x1xf32, #tpu.memory_space<vmem>>, vector<1x1xf32>
    tpu.vector_store %arg8[%c0_32, %c0_33], %81 {strides = array<i32>} : memref<1x1xf32, #tpu.memory_space<vmem>>, vector<1x1xf32>,
    %c0_i32_34 = arith.constant 0 : i32
    %83 = arith.cmpi eq, %arg0, %c0_i32_34 : i32
    %84 = arith.extui %83 : i1 to i32
    %c0_i32_35 = arith.constant 0 : i32
    %85 = arith.cmpi ne, %84, %c0_i32_35 : i32
    scf.if %85 {
      %c0_36 = arith.constant 0 : index
      %c0_37 = arith.constant 0 : index
      %86 = vector.load %arg6[%c0_36, %c0_37] : memref<1x1xf32, #tpu.memory_space<vmem>>, vector<1x1xf32>
      %cst_38 = arith.constant 8.000000e+00 : f32
      %87 = vector.broadcast %cst_38 : f32 to vector<1x1xf32>
      %88 = arith.divf %86, %87 : vector<1x1xf32>
      %c0_39 = arith.constant 0 : index
      %c0_40 = arith.constant 0 : index
      %89 = vector.load %arg7[%c0_39, %c0_40] : memref<1x1xf32, #tpu.memory_space<vmem>>, vector<1x1xf32>
      %c0_41 = arith.constant 0 : index
      %c0_42 = arith.constant 0 : index
      %90 = vector.load %arg8[%c0_41, %c0_42] : memref<1x1xf32, #tpu.memory_space<vmem>>, vector<1x1xf32>
      %91 = arith.divf %89, %90 : vector<1x1xf32>
      %cst_43 = arith.constant 5.000000e-01 : f32
      %92 = vector.broadcast %cst_43 : f32 to vector<1x1xf32>
      %93 = arith.mulf %92, %88 : vector<1x1xf32>
      %cst_44 = arith.constant 5.000000e-01 : f32
      %94 = vector.broadcast %cst_44 : f32 to vector<1x1xf32>
      %95 = arith.mulf %94, %91 : vector<1x1xf32>
      %96 = arith.addf %93, %95 : vector<1x1xf32>
      %c0_45 = arith.constant 0 : index
      %c0_46 = arith.constant 0 : index
      %97 = vector.load %arg5[%c0_45, %c0_46] : memref<1x1xf32, #tpu.memory_space<vmem>>, vector<1x1xf32>
      tpu.vector_store %arg5[%c0_45, %c0_46], %96 {strides = array<i32>} : memref<1x1xf32, #tpu.memory_space<vmem>>, vector<1x1xf32>,
    } else {
    }
    return
  }
  func.func @transform_0(%arg0: i32) -> (i32, i32) {
    %c0_i32 = arith.constant 0 : i32
    %c0_i32_0 = arith.constant 0 : i32
    return %arg0, %c0_i32 : i32, i32
  }
  func.func @transform_1(%arg0: i32) -> (i32, i32) {
    %c0_i32 = arith.constant 0 : i32
    %c0_i32_0 = arith.constant 0 : i32
    return %arg0, %c0_i32 : i32, i32
  }
  func.func @transform_2(%arg0: i32) -> (i32, i32) {
    %c0_i32 = arith.constant 0 : i32
    %c0_i32_0 = arith.constant 0 : i32
    return %arg0, %c0_i32 : i32, i32
  }
  func.func @transform_3(%arg0: i32) -> (i32, i32) {
    %c0_i32 = arith.constant 0 : i32
    %c0_i32_0 = arith.constant 0 : i32
    return %arg0, %c0_i32 : i32, i32
  }
  func.func @transform_4(%arg0: i32) -> (i32, i32) {
    %c0_i32 = arith.constant 0 : i32
    %c0_i32_0 = arith.constant 0 : i32
    %c0_i32_1 = arith.constant 0 : i32
    return %c0_i32, %c0_i32_0 : i32, i32
  }
}

</mosaic_0001>

<llo_original>
// kernel: tpu_custom_call.1
$region0: #{tpu_custom_call.1}
  #allocation0 [shape = 'u32[]', space=smem, size = 0x4, offset = 0x4, fixed_abs, tag = 'smem constant byte address 0x4 - core index']
  #allocation1 [shape = 'u32[144,128]{1,0:T(1,128)}', space=vmem, size = 0x12000, scoped, tag = 'internal scratch']
  #allocation2 [shape = 'f32[1,1]{1,0:T(1,128)}', space=vmem, size = 0x200, scoped, tag = 'scratch operand']
  #allocation3 [shape = 'f32[1,1]{1,0:T(1,128)}', space=vmem, size = 0x200, scoped, tag = 'scratch operand']
  #allocation4 [shape = 'f32[1,1]{1,0:T(1,128)}', space=vmem, size = 0x200, scoped, tag = 'scratch operand']
  %s0 = inlined_call_operand.vmem [shape: f32[8,32], index: 0, kind: input, shape index: {}]
  %s1 = inlined_call_operand.hbm [shape: f32[8,32], index: 1, kind: input, shape index: {}]
  %s2 = inlined_call_operand.vmem [shape: f32[8,16], index: 2, kind: input, shape index: {}]
  %s3 = inlined_call_operand.vmem [shape: s32[8,1], index: 3, kind: input, shape index: {}]
  %s4 = inlined_call_operand.hbm [shape: f32[1,1], index: 4, kind: output, shape index: {}]
  %s5 = sld [smem:[#allocation0]]
  $region38: #{tpu_custom_call.1} parent=0
    _
  %s7 = ssub.s32 1, %s5
  %s8 = scalar_select 0, %s7, %s5
  $region1: #{tpu_custom_call.1} parent=0
    #allocation5 [shape = 'u8[4096]{0}', space=vmem, size = 0x1000, scoped, tag = 'input window, operand 1, single buffered']
    #allocation6 [shape = 's32[1]{0}', space=sflag, size = 0x4, scoped, tag = 'scoped memory for tpu_custom_call.1']
    #allocation7 [shape = 's32[1]{0}', space=sflag, size = 0x4, scoped, tag = 'scoped memory for tpu_custom_call.1']
    #allocation8 [shape = 'u8[512]{0}', space=vmem, size = 0x400, scoped, tag = 'output window, operand 0, single buffered']
    %9 = vsyncpa [#allocation6], 0
    %10 = vsyncpa [#allocation7], 0
    // Predicated region
    $region2: #{tpu_custom_call.1} parent=1 // pred_check
      _
    $region3: #{tpu_custom_call.1} parent=1 // pred_check_branch
      %12 = sbr.rel (0) target = $region5
    $region4: #{tpu_custom_call.1} parent=1 // pred_region
      _
    $region5: #{tpu_custom_call.1} parent=1 // pred_fallthru
      _
    // Predicated region
    $region6: #{tpu_custom_call.1} parent=1 // pred_check
      _
    $region7: #{tpu_custom_call.1} parent=1 // pred_check_branch
      %14 = sbr.rel (0) target = $region9
    $region8: #{tpu_custom_call.1} parent=1 // pred_region
      %s16 = ssub.s32 128, 128
      %17 = vsyncadd [#allocation6], %s16
      %s19 = sshll.u32 [#allocation5], 4
      %s20 = int_to_ptr.vmem [resolvable:$true] %s19
      %22 = dma.hbm_to_vmem [thread:$0]  %s1, 128, %s20, [#allocation6]
    $region9: #{tpu_custom_call.1} parent=1 // pred_fallthru
      _
    // Predicated region
    $region10: #{tpu_custom_call.1} parent=1 // pred_check
      _
    $region11: #{tpu_custom_call.1} parent=1 // pred_check_branch
      %24 = sbr.rel (0) target = $region13
    $region12: #{tpu_custom_call.1} parent=1 // pred_region
      _
    $region13: #{tpu_custom_call.1} parent=1 // pred_fallthru
      _
    // Predicated region
    $region14: #{tpu_custom_call.1} parent=1 // pred_check
      _
    $region15: #{tpu_custom_call.1} parent=1 // pred_check_branch
      %26 = sbr.rel (0) target = $region17
    $region16: #{tpu_custom_call.1} parent=1 // pred_region
      _
    $region17: #{tpu_custom_call.1} parent=1 // pred_fallthru
      _
    // Predicated region
    $region18: #{tpu_custom_call.1} parent=1 // pred_check
      _
    $region19: #{tpu_custom_call.1} parent=1 // pred_check_branch
      %28 = sbr.rel (0) target = $region21
    $region20: #{tpu_custom_call.1} parent=1 // pred_region
      %29 = dma.done [#allocation6], 128
    $region21: #{tpu_custom_call.1} parent=1 // pred_fallthru
      _
    %p30 = scmp.eq.s32.totalorder 0, 0
    // Predicated region
    $region22: #{tpu_custom_call.1} parent=1 // pred_check
      %p31 = pneg %p30
    $region23: #{tpu_custom_call.1} parent=1 // pred_check_branch
      %33 = sbr.rel (%p31) target = $region25
    $region24: #{tpu_custom_call.1} parent=1 // pred_region
      %vm34 = vcmask 0
      %35 = vst.msk [vmem:[#allocation2] sm:$0x1] %vm34, 0.0
      %36 = vst.msk [vmem:[#allocation3] sm:$0x1] %vm34, 0.0
      %37 = vst.msk [vmem:[#allocation4] sm:$0x1] %vm34, 0.0
    $region25: #{tpu_custom_call.1} parent=1 // pred_fallthru
      _
    %s38 = smul.u32 0, 8
    %v39 = vlaneseq
    %v40 = vshrl.u32 %v39, 7
    %v41 = vstv %s38
    %v42 = vadd.s32 %v41, %v40
    %vm43 = vcmp.lt.s32.totalorder %v42, 8
    %v44 = vsel %vm43, 1, 0
    %v45 = vcvt.s32.f32 %v44
    %v46 = vld [vmem:[%s0] sm:$0xff]
    %v47 = vld [vmem:[#allocation5] sm:$0xff]
    %v48 = vmul.f32 %v46, %v47
    %vm49 = vcmask 261120
    %v50 = vsel %vm49, %v48, 0.0
    %51 = vadd.xlane.f32.xlu0 %v50
    %v52 = vpop.xlane.xlu0 %51
    %v53 = vmul.f32 %v46, %v46
    %v54 = vsel %vm49, %v53, 0.0
    %55 = vadd.xlane.f32.xlu0 %v54
    %v56 = vpop.xlane.xlu0 %55
    %v57 = vmul.f32 %v47, %v47
    %v58 = vsel %vm49, %v57, 0.0
    %59 = vadd.xlane.f32.xlu0 %v58
    %v60 = vpop.xlane.xlu0 %59
    %v61 = vmax.f32 %v56, 1e-16
    %v62 = vmax.f32 %v60, 1e-16
    %v63 = vmul.f32 %v61, %v62
    %v64 = vrsqrt.pop %v63
    %v65 = vmul.f32 %v52, %v64
    %v66 = vld [vmem:[#allocation2] sm:$0x1]
    %v67 = vsub.f32 1.0, %v65
    %v68 = vmul.f32 %v67, %v45
    %vm69 = vcmask 7168
    %v70 = vsel %vm69, %v68, 0.0
    %71 = vadd.xlane.f32.xlu0 %v70
    %v72 = vpop.xlane.xlu0 %71
    %v73 = vrot.slane %v72, 4
    %v74 = vadd.f32 %v72, %v73
    %v75 = vrot.slane %v74, 2
    %v76 = vadd.f32 %v74, %v75
    %v77 = vrot.slane %v76, 1
    %v78 = vadd.f32 %v76, %v77
    %s79 = vtos %v78
    %v80 = vstv %s79
    %v81 = vadd.f32 %v66, %v80
    %vm82 = vcmask 0
    %83 = vst.msk [vmem:[#allocation2] sm:$0x1] %vm82, %v81
    %v84 = vld [vmem:[%s2] sm:$0xff]
    %v85 = vld [vmem:[%s3] sm:$0xff]
    %vm86 = vcmask 130048
    %v87 = vsel %vm86, %v84, -inf
    %88 = vmax.xlane.f32.xlu0 %v87
    %v89 = vpop.xlane.xlu0 %88
    %v90 = vsub.f32 %v84, %v89
    %v91 = vmul.f32 %v90, 1.442695
    %v92 = vpow.pop %v91
    %v93 = vsel %vm86, %v92, 0.0
    %94 = vadd.xlane.f32.xlu0 %v93
    %v95 = vpop.xlane.xlu0 %94
    %v96 = vlog2.pop %v95
    %v97 = vmul.f32 %v96, 0.6931472
    %v98 = vadd.f32 %v89, %v97
    %v99 = vlaneseq
    %v100 = vand.u32 %v99, 127
    %101 = vset.pattern.permute.xlu0 0
    %102 = vperm.xlu0 %101, %v85
    %v103 = vpop.permute.xlu0 %102
    %vm104 = vcmp.eq.s32.totalorder %v100, %v103
    %v105 = vsel %vm104, 1, 0
    %v106 = vcvt.s32.f32 %v105
    %v107 = vmul.f32 %v84, %v106
    %v108 = vsel %vm86, %v107, 0.0
    %109 = vadd.xlane.f32.xlu0 %v108
    %v110 = vpop.xlane.xlu0 %109
    %v111 = vsub.f32 %v98, %v110
    %vm112 = vcmp.ne.s32.totalorder %v85, 4294967196
    %v113 = vsel %vm112, 1.0, 0.0
    %v114 = vmul.f32 %v113, %v45
    %v115 = vld [vmem:[#allocation3] sm:$0x1]
    %v116 = vmul.f32 %v111, %v114
    %v117 = vsel %vm69, %v116, 0.0
    %118 = vadd.xlane.f32.xlu0 %v117
    %v119 = vpop.xlane.xlu0 %118
    %v120 = vrot.slane %v119, 4
    %v121 = vadd.f32 %v119, %v120
    %v122 = vrot.slane %v121, 2
    %v123 = vadd.f32 %v121, %v122
    %v124 = vrot.slane %v123, 1
    %v125 = vadd.f32 %v123, %v124
    %s126 = vtos %v125
    %v127 = vstv %s126
    %v128 = vadd.f32 %v115, %v127
    %129 = vst.msk [vmem:[#allocation3] sm:$0x1] %vm82, %v128
    %v130 = vld [vmem:[#allocation4] sm:$0x1]
    %v131 = vsel %vm69, %v114, 0.0
    %132 = vadd.xlane.f32.xlu0 %v131
    %v133 = vpop.xlane.xlu0 %132
    %v134 = vrot.slane %v133, 4
    %v135 = vadd.f32 %v133, %v134
    %v136 = vrot.slane %v135, 2
    %v137 = vadd.f32 %v135, %v136
    %v138 = vrot.slane %v137, 1
    %v139 = vadd.f32 %v137, %v138
    %s140 = vtos %v139
    %v141 = vstv %s140
    %v142 = vadd.f32 %v130, %v141
    %143 = vst.msk [vmem:[#allocation4] sm:$0x1] %vm82, %v142
    // Predicated region
    $region26: #{tpu_custom_call.1} parent=1 // pred_check
      %p144 = pneg %p30
    $region27: #{tpu_custom_call.1} parent=1 // pred_check_branch
      %146 = sbr.rel (%p144) target = $region29
    $region28: #{tpu_custom_call.1} parent=1 // pred_region
      %v147 = vld [vmem:[#allocation2] sm:$0x1]
      %v148 = vrcp.pop 8.0
      %v149 = vmul.f32 %v147, %v148
      %v150 = vld [vmem:[#allocation3] sm:$0x1]
      %v151 = vld [vmem:[#allocation4] sm:$0x1]
      %v152 = vrcp.pop %v151
      %v153 = vmul.f32 %v150, %v152
      %v154 = vmul.f32 %v149, 0.5
      %v155 = vmul.f32 %v153, 0.5
      %v156 = vadd.f32 %v154, %v155
      %157 = vst.msk [vmem:[#allocation8] sm:$0x1] %vm82, %v156
    $region29: #{tpu_custom_call.1} parent=1 // pred_fallthru
      _
    // Predicated region
    $region30: #{tpu_custom_call.1} parent=1 // pred_check
      _
    $region31: #{tpu_custom_call.1} parent=1 // pred_check_branch
      %159 = sbr.rel (0) target = $region33
    $region32: #{tpu_custom_call.1} parent=1 // pred_region
      %s161 = ssub.s32 16, 16
      %162 = vsyncadd [#allocation7], %s161
      %s164 = sshll.u32 [#allocation8], 4
      %s165 = int_to_ptr.vmem [resolvable:$true] %s164
      %167 = dma.vmem_to_hbm [thread:$0]  %s165, 16, %s4, [#allocation7]
    $region33: #{tpu_custom_call.1} parent=1 // pred_fallthru
      _
    // Predicated region
    $region34: #{tpu_custom_call.1} parent=1 // pred_check
      _
    $region35: #{tpu_custom_call.1} parent=1 // pred_check_branch
      %169 = sbr.rel (0) target = $region37
    $region36: #{tpu_custom_call.1} parent=1 // pred_region
      %170 = dma.done [#allocation7], 16
    $region37: #{tpu_custom_call.1} parent=1 // pred_fallthru
      _
    %171 = vsyncpa [#allocation6], 1
    %172 = vsyncpa [#allocation7], 1

</llo_original>
